<compile_context>
chip_gen: v6e
topology: v6e:2x2x1
jax: 0.10.0
libtpu: 0.0.40
codegen_flags: <defaults>
</compile_context>

<pallas_src>
import functools

import jax
import jax.numpy as jnp
from jax.experimental import pallas as pl
from jax.experimental.pallas import tpu as pltpu


def _attn_decoder_kernel(tok_ref, h0_ref, emb_ref, enc_ref, w_ref, out_ref, hid_ref):
    f32 = jnp.float32
    H = h0_ref.shape[1]            # hidden size
    L = enc_ref.shape[0]           # max_length
    V = emb_ref.shape[0]           # output (vocab) size
    P = out_ref.shape[1]           # lane-dense packed-output width (128)

    t = pl.program_id(0)

    @pl.when(t == 0)
    def _():                       # hidden carry lives in VMEM scratch across the grid
        hid_ref[...] = h0_ref[...]

    # weight/bias slab layout (each weight block is H rows, data starts at lane 0):
    #   0:W_ae 1:W_ah 2:W_ce 3:W_ca 4:W_ir 5:W_iz 6:W_in 7:W_hr 8:W_hz 9:W_hn 10:W_out
    #   then 9 bias rows: b_attn b_comb b_ir b_iz b_in b_hr b_hz b_hn b_out
    def blk(i, w):
        return w_ref[i * H:(i + 1) * H, :w]

    R = 11 * H

    def brow(i, w):
        return w_ref[R + i:R + i + 1, :w]

    def dot(a, b):
        return jnp.dot(a, b, preferred_element_type=f32)

    def sig(v):                    # numerically stable sigmoid on the EUP
        return 0.5 * (jnp.tanh(0.5 * v) + 1.0)

    tok = tok_ref[t]
    emb = emb_ref[pl.ds(tok, 1), :]      # (1,H) in-kernel embedding gather (dropout = id, eval)
    hid = hid_ref[...]                   # (1,H)

    # attn_weights = softmax(emb @ W_ae + hid @ W_ah + b_attn)   -- exact normalization
    logits = dot(emb, blk(0, L)) + dot(hid, blk(1, L)) + brow(0, L)          # (1,L)
    m = jnp.max(logits, axis=-1, keepdims=True)
    e = jnp.exp(logits - m)
    attn_w = e / jnp.sum(e, axis=-1, keepdims=True)                          # (1,L)

    # attn_applied = attn_weights @ encoder_outputs
    attn_applied = dot(attn_w, enc_ref[...])                                 # (1,H)

    # attn_combine(cat(emb, attn_applied)) + ReLU  -- per-operand halves, no lane concat
    x = jnp.maximum(dot(emb, blk(2, H)) + dot(attn_applied, blk(3, H)) + brow(1, H), 0.0)

    # single-step GRU cell, per-gate dots (PyTorch semantics: n uses r*(W_hn h + b_hn))
    r = sig(dot(x, blk(4, H)) + brow(2, H) + dot(hid, blk(7, H)) + brow(5, H))
    z = sig(dot(x, blk(5, H)) + brow(3, H) + dot(hid, blk(8, H)) + brow(6, H))
    n = jnp.tanh(dot(x, blk(6, H)) + brow(4, H) + r * (dot(hid, blk(9, H)) + brow(7, H)))
    h_new = (1.0 - z) * n + z * hid                                          # (1,H)

    # output = log_softmax(out(gru_output))   -- exact
    out_logits = dot(h_new, blk(10, V)) + brow(8, V)                         # (1,V)
    m2 = jnp.max(out_logits, axis=-1, keepdims=True)
    s = out_logits - m2
    logp = s - jnp.log(jnp.sum(jnp.exp(s), axis=-1, keepdims=True))

    hid_ref[...] = h_new                                                     # carry

    # one lane-dense packed row per step: [logp | h_new | attn_w | zero pad]
    used = V + H + L
    parts = [logp, h_new, attn_w]
    if P > used:
        parts.append(jnp.zeros((1, P - used), f32))
    out_ref[pl.ds(t, 1), :] = jnp.concatenate(parts, axis=-1)


def pack_for_kernel(params):
    """One-time packing of all weights + biases into a single lane-dense (rows,128) slab."""
    H = params["w_ih"].shape[0]
    V = params["w_out"].shape[1]
    L = params["w_attn"].shape[1]
    LANES = 128

    w_attn = params["w_attn"].astype(jnp.float32)   # (2H, L)
    w_comb = params["w_comb"].astype(jnp.float32)   # (2H, H)
    w_ih = params["w_ih"].astype(jnp.float32)       # (H, 3H) gate order [r|z|n]
    w_hh = params["w_hh"].astype(jnp.float32)       # (H, 3H)
    w_out = params["w_out"].astype(jnp.float32)     # (H, V)

    blocks = [
        w_attn[:H], w_attn[H:],                                   # W_ae, W_ah
        w_comb[:H], w_comb[H:],                                   # W_ce, W_ca
        w_ih[:, :H], w_ih[:, H:2 * H], w_ih[:, 2 * H:],           # W_ir, W_iz, W_in
        w_hh[:, :H], w_hh[:, H:2 * H], w_hh[:, 2 * H:],           # W_hr, W_hz, W_hn
        w_out,                                                    # W_out
    ]
    bias_rows = [
        params["b_attn"], params["b_comb"],
        params["b_ih"][:H], params["b_ih"][H:2 * H], params["b_ih"][2 * H:],
        params["b_hh"][:H], params["b_hh"][H:2 * H], params["b_hh"][2 * H:],
        params["b_out"],
    ]

    def pad_cols(a):
        a = jnp.asarray(a, jnp.float32).reshape(-1, a.shape[-1]) if a.ndim == 2 \
            else jnp.asarray(a, jnp.float32).reshape(1, -1)
        return jnp.pad(a, ((0, 0), (0, LANES - a.shape[-1])))

    slab = jnp.concatenate([pad_cols(b) for b in blocks]
                           + [pad_cols(b) for b in bias_rows], axis=0)
    pad_r = (-slab.shape[0]) % 8
    if pad_r:
        slab = jnp.pad(slab, ((0, pad_r), (0, 0)))

    return {"embedding": params["embedding"].astype(jnp.float32),
            "slab": slab, "H": H, "V": V, "L": L}


def attn_decoder_decode(kp, token_ids, hidden, encoder_outputs):
    """T teacher-forced decode steps of AttnDecoderRNN.forward inside ONE kernel.

    token_ids: (T,) int32; hidden: (1,1,H) initial hidden; encoder_outputs: (L,H).
    Returns (log_probs (T,V), final_hidden (1,1,H), attn_weights (T,L)).
    T=1 is exactly the module's single-step forward().
    """
    H, V, L = kp["H"], kp["V"], kp["L"]
    T = token_ids.shape[0]
    used = V + H + L
    P = ((used + 127) // 128) * 128            # lane-dense packed output width

    h0 = hidden.reshape(1, H).astype(jnp.float32)
    vmem = pl.BlockSpec(memory_space=pltpu.MemorySpace.VMEM)   # whole-array, VMEM-resident

    packed = pl.pallas_call(
        _attn_decoder_kernel,
        out_shape=jax.ShapeDtypeStruct((T, P), jnp.float32),
        grid_spec=pltpu.PrefetchScalarGridSpec(
            num_scalar_prefetch=1,                 # token ids -> SMEM
            grid=(T,),                             # decode-step loop inside the kernel
            in_specs=[vmem, vmem, vmem, vmem],     # h0, embedding, enc_outputs, slab
            out_specs=vmem,                        # (T,P) packed slab, written back once
            scratch_shapes=[pltpu.VMEM((1, H), jnp.float32)],   # hidden carry
        ),
        compiler_params=pltpu.CompilerParams(dimension_semantics=("arbitrary",)),
    )(token_ids.astype(jnp.int32), h0, kp["embedding"],
      encoder_outputs.astype(jnp.float32), kp["slab"])

    logp = packed[:, :V]
    hids = packed[:, V:V + H]
    attn_w = packed[:, V + H:V + H + L]
    return logp, hids[-1].reshape(1, 1, H), attn_w


def attn_decoder_forward(kp, input_idx, hidden, encoder_outputs):
    """Single step, mirroring AttnDecoderRNN.forward exactly (inference)."""
    tok = jnp.reshape(input_idx, (1,)).astype(jnp.int32)
    return attn_decoder_decode(kp, tok, hidden, encoder_outputs)


def _reference_decode(params, token_ids, hidden, encoder_outputs):
    """Pure-JAX reference loop with identical per-step semantics (sanity check)."""
    H = params["w_ih"].shape[0]
    hid = hidden.reshape(1, H)
    logps, attns = [], []
    for i in range(token_ids.shape[0]):
        emb = params["embedding"][token_ids[i]].reshape(1, H)
        logits = jnp.concatenate([emb, hid], -1) @ params["w_attn"] + params["b_attn"]
        attn_w = jax.nn.softmax(logits, axis=-1)
        attn_applied = attn_w @ encoder_outputs
        x = jax.nn.relu(jnp.concatenate([emb, attn_applied], -1) @ params["w_comb"]
                        + params["b_comb"])
        gi = x @ params["w_ih"] + params["b_ih"]
        gh = hid @ params["w_hh"] + params["b_hh"]
        r = jax.nn.sigmoid(gi[:, :H] + gh[:, :H])
        z = jax.nn.sigmoid(gi[:, H:2 * H] + gh[:, H:2 * H])
        n = jnp.tanh(gi[:, 2 * H:] + r * gh[:, 2 * H:])
        hid = (1.0 - z) * n + z * hid
        logps.append(jax.nn.log_softmax(hid @ params["w_out"] + params["b_out"], axis=-1))
        attns.append(attn_w)
    return jnp.concatenate(logps, 0), hid.reshape(1, 1, H), jnp.concatenate(attns, 0)


def init_params(key, hidden_size, output_size, max_length):
    """PyTorch-style uniform(-1/sqrt(fan_in), 1/sqrt(fan_in)) init (x @ W layout)."""
    H, V, L = hidden_size, output_size, max_length
    keys = jax.random.split(key, 12)
    ki = iter(keys)

    def unif(k, shape, fan_in):
        bound = 1.0 / jnp.sqrt(jnp.float32(fan_in))
        return jax.random.uniform(k, shape, jnp.float32, -bound, bound)

    p = {}
    p["embedding"] = jax.random.normal(next(ki), (V, H), jnp.float32)
    p["w_attn"] = unif(next(ki), (2 * H, L), 2 * H)   # attn: Linear(2H -> L)
    p["b_attn"] = unif(next(ki), (L,), 2 * H)
    p["w_comb"] = unif(next(ki), (2 * H, H), 2 * H)   # attn_combine: Linear(2H -> H)
    p["b_comb"] = unif(next(ki), (H,), 2 * H)
    p["w_ih"] = unif(next(ki), (H, 3 * H), H)         # GRU gates [r|z|n]
    p["b_ih"] = unif(next(ki), (3 * H,), H)
    p["w_hh"] = unif(next(ki), (H, 3 * H), H)
    p["b_hh"] = unif(next(ki), (3 * H,), H)
    p["w_out"] = unif(next(ki), (H, V), H)            # out: Linear(H -> V)
    p["b_out"] = unif(next(ki), (V,), H)
    return p


if __name__ == "__main__":
    HIDDEN = 32      # hidden_size
    VOCAB = 48       # output_size
    MAXLEN = 8       # max_length
    STEPS = 6        # decode steps handled by one kernel launch

    root = jax.random.PRNGKey(0)
    k_param, k_hid, k_enc, k_tok = jax.random.split(root, 4)

    params = init_params(k_param, HIDDEN, VOCAB, MAXLEN)
    kparams = pack_for_kernel(params)                                    # packed once, outside jit

    hidden = jax.random.normal(k_hid, (1, 1, HIDDEN), jnp.float32)       # (1,1,H)
    encoder_outputs = jax.random.normal(k_enc, (MAXLEN, HIDDEN), jnp.float32)
    token_ids = jax.random.randint(k_tok, (STEPS,), 0, VOCAB, dtype=jnp.int32)

    decode = jax.jit(functools.partial(attn_decoder_decode, kparams))

    # single step == the module's forward()
    logp1, hid1, attn1 = decode(token_ids[:1], hidden, encoder_outputs)
    # multi-step teacher-forced decode, loop fully inside the kernel
    logpT, hidT, attnT = decode(token_ids, hidden, encoder_outputs)
    jax.block_until_ready((logp1, hid1, attn1, logpT, hidT, attnT))

    r_logp1, r_hid1, r_attn1 = _reference_decode(params, token_ids[:1], hidden, encoder_outputs)
    r_logpT, r_hidT, r_attnT = _reference_decode(params, token_ids, hidden, encoder_outputs)

    assert logp1.shape == (1, VOCAB)
    assert hid1.shape == (1, 1, HIDDEN)
    assert attn1.shape == (1, MAXLEN)
    assert logpT.shape == (STEPS, VOCAB)
    assert attnT.shape == (STEPS, MAXLEN)

    assert jnp.allclose(logp1, r_logp1, atol=5e-3, rtol=5e-3)
    assert jnp.allclose(hid1, r_hid1, atol=5e-3, rtol=5e-3)
    assert jnp.allclose(attn1, r_attn1, atol=5e-3, rtol=5e-3)
    # multi-step: matmul-precision differences compound slightly through the hidden carry
    assert jnp.allclose(logpT, r_logpT, atol=2e-2, rtol=2e-2)
    assert jnp.allclose(hidT, r_hidT, atol=2e-2, rtol=2e-2)
    assert jnp.allclose(attnT, r_attnT, atol=2e-2, rtol=2e-2)

    print("KERNEL_OK")
</pallas_src>

<mosaic_0001>
module attributes {stable_mosaic.version = 11 : i64} {
  func.func @_attn_decoder_kernel(%arg0: i32, %arg1: memref<1xi32, #tpu.memory_space<smem>>, %arg2: memref<1x32xf32, #tpu.memory_space<vmem>>, %arg3: memref<48x32xf32, #tpu.memory_space<vmem>>, %arg4: memref<8x32xf32, #tpu.memory_space<vmem>>, %arg5: memref<368x128xf32, #tpu.memory_space<vmem>>, %arg6: memref<1x128xf32, #tpu.memory_space<vmem>>, %arg7: memref<1x32xf32, #tpu.memory_space<vmem>>) attributes {dimension_semantics = [#tpu.dimension_semantics<arbitrary>], iteration_bounds = array<i64: 1>, scalar_prefetch = 1 : i64, scratch_operands = 1 : i64, tpu.core_type = #tpu.core_type<tc>, window_params = [{pipeline_mode = #tpu.pipeline_mode<synchronous>, transform_indices = @transform_0, window_bounds = array<i64: 1, 32>}, {pipeline_mode = #tpu.pipeline_mode<synchronous>, transform_indices = @transform_1, window_bounds = array<i64: 48, 32>}, {pipeline_mode = #tpu.pipeline_mode<synchronous>, transform_indices = @transform_2, window_bounds = array<i64: 8, 32>}, {pipeline_mode = #tpu.pipeline_mode<synchronous>, transform_indices = @transform_3, window_bounds = array<i64: 368, 128>}, {pipeline_mode = #tpu.pipeline_mode<synchronous>, transform_indices = @transform_4, window_bounds = array<i64: 1, 128>}]} {
    %c0_i32 = arith.constant 0 : i32
    %0 = arith.cmpi eq, %arg0, %c0_i32 : i32
    %1 = arith.extui %0 : i1 to i32
    %c0_i32_0 = arith.constant 0 : i32
    %2 = arith.cmpi ne, %1, %c0_i32_0 : i32
    scf.if %2 {
      %c0_53 = arith.constant 0 : index
      %c0_54 = arith.constant 0 : index
      %102 = vector.load %arg2[%c0_53, %c0_54] : memref<1x32xf32, #tpu.memory_space<vmem>>, vector<1x32xf32>
      %c0_55 = arith.constant 0 : index
      %c0_56 = arith.constant 0 : index
      %103 = vector.load %arg7[%c0_55, %c0_56] : memref<1x32xf32, #tpu.memory_space<vmem>>, vector<1x32xf32>
      tpu.vector_store %arg7[%c0_55, %c0_56], %102 {strides = array<i32>} : memref<1x32xf32, #tpu.memory_space<vmem>>, vector<1x32xf32>,
    } else {
    }
    %3 = arith.index_cast %arg0 : i32 to index
    %4 = memref.load %arg1[%3] : memref<1xi32, #tpu.memory_space<smem>>
    %5 = arith.index_cast %4 : i32 to index
    %c0 = arith.constant 0 : index
    %6 = vector.load %arg3[%5, %c0] : memref<48x32xf32, #tpu.memory_space<vmem>>, vector<1x32xf32>
    %c0_1 = arith.constant 0 : index
    %c0_2 = arith.constant 0 : index
    %7 = vector.load %arg7[%c0_1, %c0_2] : memref<1x32xf32, #tpu.memory_space<vmem>>, vector<1x32xf32>
    %c0_3 = arith.constant 0 : index
    %c0_4 = arith.constant 0 : index
    %8 = vector.load %arg5[%c0_3, %c0_4] : memref<368x128xf32, #tpu.memory_space<vmem>>, vector<32x8xf32>
    %cst = arith.constant dense<0.000000e+00> : vector<1x8xf32>
    %9 = tpu.matmul %6, %8, %cst {dimension_numbers = #tpu.dot_dimension_numbers<[1], [0], [0], [1], [0, 0, 1, 1], [], []>} : vector<1x32xf32>, vector<32x8xf32>, vector<1x8xf32> -> vector<1x8xf32>
    %c32 = arith.constant 32 : index
    %c0_5 = arith.constant 0 : index
    %10 = vector.load %arg5[%c32, %c0_5] : memref<368x128xf32, #tpu.memory_space<vmem>>, vector<32x8xf32>
    %cst_6 = arith.constant dense<0.000000e+00> : vector<1x8xf32>
    %11 = tpu.matmul %7, %10, %cst_6 {dimension_numbers = #tpu.dot_dimension_numbers<[1], [0], [0], [1], [0, 0, 1, 1], [], []>} : vector<1x32xf32>, vector<32x8xf32>, vector<1x8xf32> -> vector<1x8xf32>
    %12 = arith.addf %9, %11 : vector<1x8xf32>
    %c352 = arith.constant 352 : index
    %c0_7 = arith.constant 0 : index
    %13 = vector.load %arg5[%c352, %c0_7] : memref<368x128xf32, #tpu.memory_space<vmem>>, vector<1x8xf32>
    %14 = arith.addf %12, %13 : vector<1x8xf32>
    %cst_8 = arith.constant dense<0xFF800000> : vector<1xf32>
    %15 = vector.multi_reduction <maximumf>, %14, %cst_8 [1] : vector<1x8xf32> to vector<1xf32>
    %16 = vector.shape_cast %15 : vector<1xf32> to vector<1x1xf32>
    %17 = vector.broadcast %16 : vector<1x1xf32> to vector<1x8xf32>
    %18 = arith.subf %14, %17 : vector<1x8xf32>
    %19 = math.exp %18 : vector<1x8xf32>
    %cst_9 = arith.constant dense<0.000000e+00> : vector<1xf32>
    %20 = vector.multi_reduction <add>, %19, %cst_9 [1] : vector<1x8xf32> to vector<1xf32>
    %21 = vector.shape_cast %20 : vector<1xf32> to vector<1x1xf32>
    %22 = vector.broadcast %21 : vector<1x1xf32> to vector<1x8xf32>
    %23 = arith.divf %19, %22 : vector<1x8xf32>
    %c0_10 = arith.constant 0 : index
    %c0_11 = arith.constant 0 : index
    %24 = vector.load %arg4[%c0_10, %c0_11] : memref<8x32xf32, #tpu.memory_space<vmem>>, vector<8x32xf32>
    %cst_12 = arith.constant dense<0.000000e+00> : vector<1x32xf32>
    %25 = tpu.matmul %23, %24, %cst_12 {dimension_numbers = #tpu.dot_dimension_numbers<[1], [0], [0], [1], [0, 0, 1, 1], [], []>} : vector<1x8xf32>, vector<8x32xf32>, vector<1x32xf32> -> vector<1x32xf32>
    %c64 = arith.constant 64 : index
    %c0_13 = arith.constant 0 : index
    %26 = vector.load %arg5[%c64, %c0_13] : memref<368x128xf32, #tpu.memory_space<vmem>>, vector<32x32xf32>
    %cst_14 = arith.constant dense<0.000000e+00> : vector<1x32xf32>
    %27 = tpu.matmul %6, %26, %cst_14 {dimension_numbers = #tpu.dot_dimension_numbers<[1], [0], [0], [1], [0, 0, 1, 1], [], []>} : vector<1x32xf32>, vector<32x32xf32>, vector<1x32xf32> -> vector<1x32xf32>
    %c96 = arith.constant 96 : index
    %c0_15 = arith.constant 0 : index
    %28 = vector.load %arg5[%c96, %c0_15] : memref<368x128xf32, #tpu.memory_space<vmem>>, vector<32x32xf32>
    %cst_16 = arith.constant dense<0.000000e+00> : vector<1x32xf32>
    %29 = tpu.matmul %25, %28, %cst_16 {dimension_numbers = #tpu.dot_dimension_numbers<[1], [0], [0], [1], [0, 0, 1, 1], [], []>} : vector<1x32xf32>, vector<32x32xf32>, vector<1x32xf32> -> vector<1x32xf32>
    %30 = arith.addf %27, %29 : vector<1x32xf32>
    %c353 = arith.constant 353 : index
    %c0_17 = arith.constant 0 : index
    %31 = vector.load %arg5[%c353, %c0_17] : memref<368x128xf32, #tpu.memory_space<vmem>>, vector<1x32xf32>
    %32 = arith.addf %30, %31 : vector<1x32xf32>
    %cst_18 = arith.constant 0.000000e+00 : f32
    %33 = vector.broadcast %cst_18 : f32 to vector<1x32xf32>
    %34 = arith.maximumf %32, %33 : vector<1x32xf32>
    %c128 = arith.constant 128 : index
    %c0_19 = arith.constant 0 : index
    %35 = vector.load %arg5[%c128, %c0_19] : memref<368x128xf32, #tpu.memory_space<vmem>>, vector<32x32xf32>
    %cst_20 = arith.constant dense<0.000000e+00> : vector<1x32xf32>
    %36 = tpu.matmul %34, %35, %cst_20 {dimension_numbers = #tpu.dot_dimension_numbers<[1], [0], [0], [1], [0, 0, 1, 1], [], []>} : vector<1x32xf32>, vector<32x32xf32>, vector<1x32xf32> -> vector<1x32xf32>
    %c354 = arith.constant 354 : index
    %c0_21 = arith.constant 0 : index
    %37 = vector.load %arg5[%c354, %c0_21] : memref<368x128xf32, #tpu.memory_space<vmem>>, vector<1x32xf32>
    %38 = arith.addf %36, %37 : vector<1x32xf32>
    %c224 = arith.constant 224 : index
    %c0_22 = arith.constant 0 : index
    %39 = vector.load %arg5[%c224, %c0_22] : memref<368x128xf32, #tpu.memory_space<vmem>>, vector<32x32xf32>
    %cst_23 = arith.constant dense<0.000000e+00> : vector<1x32xf32>
    %40 = tpu.matmul %7, %39, %cst_23 {dimension_numbers = #tpu.dot_dimension_numbers<[1], [0], [0], [1], [0, 0, 1, 1], [], []>} : vector<1x32xf32>, vector<32x32xf32>, vector<1x32xf32> -> vector<1x32xf32>
    %41 = arith.addf %38, %40 : vector<1x32xf32>
    %c357 = arith.constant 357 : index
    %c0_24 = arith.constant 0 : index
    %42 = vector.load %arg5[%c357, %c0_24] : memref<368x128xf32, #tpu.memory_space<vmem>>, vector<1x32xf32>
    %43 = arith.addf %41, %42 : vector<1x32xf32>
    %cst_25 = arith.constant 5.000000e-01 : f32
    %44 = vector.broadcast %cst_25 : f32 to vector<1x32xf32>
    %45 = arith.mulf %44, %43 : vector<1x32xf32>
    %46 = math.tanh %45 : vector<1x32xf32>
    %cst_26 = arith.constant 1.000000e+00 : f32
    %47 = vector.broadcast %cst_26 : f32 to vector<1x32xf32>
    %48 = arith.addf %46, %47 : vector<1x32xf32>
    %cst_27 = arith.constant 5.000000e-01 : f32
    %49 = vector.broadcast %cst_27 : f32 to vector<1x32xf32>
    %50 = arith.mulf %49, %48 : vector<1x32xf32>
    %c160 = arith.constant 160 : index
    %c0_28 = arith.constant 0 : index
    %51 = vector.load %arg5[%c160, %c0_28] : memref<368x128xf32, #tpu.memory_space<vmem>>, vector<32x32xf32>
    %cst_29 = arith.constant dense<0.000000e+00> : vector<1x32xf32>
    %52 = tpu.matmul %34, %51, %cst_29 {dimension_numbers = #tpu.dot_dimension_numbers<[1], [0], [0], [1], [0, 0, 1, 1], [], []>} : vector<1x32xf32>, vector<32x32xf32>, vector<1x32xf32> -> vector<1x32xf32>
    %c355 = arith.constant 355 : index
    %c0_30 = arith.constant 0 : index
    %53 = vector.load %arg5[%c355, %c0_30] : memref<368x128xf32, #tpu.memory_space<vmem>>, vector<1x32xf32>
    %54 = arith.addf %52, %53 : vector<1x32xf32>
    %c256 = arith.constant 256 : index
    %c0_31 = arith.constant 0 : index
    %55 = vector.load %arg5[%c256, %c0_31] : memref<368x128xf32, #tpu.memory_space<vmem>>, vector<32x32xf32>
    %cst_32 = arith.constant dense<0.000000e+00> : vector<1x32xf32>
    %56 = tpu.matmul %7, %55, %cst_32 {dimension_numbers = #tpu.dot_dimension_numbers<[1], [0], [0], [1], [0, 0, 1, 1], [], []>} : vector<1x32xf32>, vector<32x32xf32>, vector<1x32xf32> -> vector<1x32xf32>
    %57 = arith.addf %54, %56 : vector<1x32xf32>
    %c358 = arith.constant 358 : index
    %c0_33 = arith.constant 0 : index
    %58 = vector.load %arg5[%c358, %c0_33] : memref<368x128xf32, #tpu.memory_space<vmem>>, vector<1x32xf32>
    %59 = arith.addf %57, %58 : vector<1x32xf32>
    %cst_34 = arith.constant 5.000000e-01 : f32
    %60 = vector.broadcast %cst_34 : f32 to vector<1x32xf32>
    %61 = arith.mulf %60, %59 : vector<1x32xf32>
    %62 = math.tanh %61 : vector<1x32xf32>
    %cst_35 = arith.constant 1.000000e+00 : f32
    %63 = vector.broadcast %cst_35 : f32 to vector<1x32xf32>
    %64 = arith.addf %62, %63 : vector<1x32xf32>
    %cst_36 = arith.constant 5.000000e-01 : f32
    %65 = vector.broadcast %cst_36 : f32 to vector<1x32xf32>
    %66 = arith.mulf %65, %64 : vector<1x32xf32>
    %c192 = arith.constant 192 : index
    %c0_37 = arith.constant 0 : index
    %67 = vector.load %arg5[%c192, %c0_37] : memref<368x128xf32, #tpu.memory_space<vmem>>, vector<32x32xf32>
    %cst_38 = arith.constant dense<0.000000e+00> : vector<1x32xf32>
    %68 = tpu.matmul %34, %67, %cst_38 {dimension_numbers = #tpu.dot_dimension_numbers<[1], [0], [0], [1], [0, 0, 1, 1], [], []>} : vector<1x32xf32>, vector<32x32xf32>, vector<1x32xf32> -> vector<1x32xf32>
    %c356 = arith.constant 356 : index
    %c0_39 = arith.constant 0 : index
    %69 = vector.load %arg5[%c356, %c0_39] : memref<368x128xf32, #tpu.memory_space<vmem>>, vector<1x32xf32>
    %70 = arith.addf %68, %69 : vector<1x32xf32>
    %c288 = arith.constant 288 : index
    %c0_40 = arith.constant 0 : index
    %71 = vector.load %arg5[%c288, %c0_40] : memref<368x128xf32, #tpu.memory_space<vmem>>, vector<32x32xf32>
    %cst_41 = arith.constant dense<0.000000e+00> : vector<1x32xf32>
    %72 = tpu.matmul %7, %71, %cst_41 {dimension_numbers = #tpu.dot_dimension_numbers<[1], [0], [0], [1], [0, 0, 1, 1], [], []>} : vector<1x32xf32>, vector<32x32xf32>, vector<1x32xf32> -> vector<1x32xf32>
    %c359 = arith.constant 359 : index
    %c0_42 = arith.constant 0 : index
    %73 = vector.load %arg5[%c359, %c0_42] : memref<368x128xf32, #tpu.memory_space<vmem>>, vector<1x32xf32>
    %74 = arith.addf %72, %73 : vector<1x32xf32>
    %75 = arith.mulf %50, %74 : vector<1x32xf32>
    %76 = arith.addf %70, %75 : vector<1x32xf32>
    %77 = math.tanh %76 : vector<1x32xf32>
    %cst_43 = arith.constant 1.000000e+00 : f32
    %78 = vector.broadcast %cst_43 : f32 to vector<1x32xf32>
    %79 = arith.subf %78, %66 : vector<1x32xf32>
    %80 = arith.mulf %79, %77 : vector<1x32xf32>
    %81 = arith.mulf %66, %7 : vector<1x32xf32>
    %82 = arith.addf %80, %81 : vector<1x32xf32>
    %c320 = arith.constant 320 : index
    %c0_44 = arith.constant 0 : index
    %83 = vector.load %arg5[%c320, %c0_44] : memref<368x128xf32, #tpu.memory_space<vmem>>, vector<32x48xf32>
    %cst_45 = arith.constant dense<0.000000e+00> : vector<1x48xf32>
    %84 = tpu.matmul %82, %83, %cst_45 {dimension_numbers = #tpu.dot_dimension_numbers<[1], [0], [0], [1], [0, 0, 1, 1], [], []>} : vector<1x32xf32>, vector<32x48xf32>, vector<1x48xf32> -> vector<1x48xf32>
    %c360 = arith.constant 360 : index
    %c0_46 = arith.constant 0 : index
    %85 = vector.load %arg5[%c360, %c0_46] : memref<368x128xf32, #tpu.memory_space<vmem>>, vector<1x48xf32>
    %86 = arith.addf %84, %85 : vector<1x48xf32>
    %cst_47 = arith.constant dense<0xFF800000> : vector<1xf32>
    %87 = vector.multi_reduction <maximumf>, %86, %cst_47 [1] : vector<1x48xf32> to vector<1xf32>
    %88 = vector.shape_cast %87 : vector<1xf32> to vector<1x1xf32>
    %89 = vector.broadcast %88 : vector<1x1xf32> to vector<1x48xf32>
    %90 = arith.subf %86, %89 : vector<1x48xf32>
    %91 = math.exp %90 : vector<1x48xf32>
    %cst_48 = arith.constant dense<0.000000e+00> : vector<1xf32>
    %92 = vector.multi_reduction <add>, %91, %cst_48 [1] : vector<1x48xf32> to vector<1xf32>
    %93 = vector.shape_cast %92 : vector<1xf32> to vector<1x1xf32>
    %94 = math.log %93 : vector<1x1xf32>
    %95 = vector.broadcast %94 : vector<1x1xf32> to vector<1x48xf32>
    %96 = arith.subf %90, %95 : vector<1x48xf32>
    %c0_49 = arith.constant 0 : index
    %c0_50 = arith.constant 0 : index
    %97 = vector.load %arg7[%c0_49, %c0_50] : memref<1x32xf32, #tpu.memory_space<vmem>>, vector<1x32xf32>
    tpu.vector_store %arg7[%c0_49, %c0_50], %82 {strides = array<i32>} : memref<1x32xf32, #tpu.memory_space<vmem>>, vector<1x32xf32>,
    %cst_51 = arith.constant 0.000000e+00 : f32
    %98 = vector.broadcast %cst_51 : f32 to vector<1x40xf32>
    %99 = tpu.concatenate %96, %82, %23, %98 in 1 : vector<1x48xf32>, vector<1x32xf32>, vector<1x8xf32>, vector<1x40xf32> -> vector<1x128xf32>
    %100 = arith.index_cast %arg0 : i32 to index
    %c0_52 = arith.constant 0 : index
    %101 = vector.load %arg6[%100, %c0_52] : memref<1x128xf32, #tpu.memory_space<vmem>>, vector<1x128xf32>
    tpu.vector_store %arg6[%100, %c0_52], %99 {strides = array<i32>} : memref<1x128xf32, #tpu.memory_space<vmem>>, vector<1x128xf32>,
    return
  }
  func.func @transform_0(%arg0: i32, %arg1: memref<1xi32, #tpu.memory_space<smem>>) -> (i32, i32) {
    %c0_i32 = arith.constant 0 : i32
    %c0_i32_0 = arith.constant 0 : i32
    %c0_i32_1 = arith.constant 0 : i32
    return %c0_i32, %c0_i32_0 : i32, i32
  }
  func.func @transform_1(%arg0: i32, %arg1: memref<1xi32, #tpu.memory_space<smem>>) -> (i32, i32) {
    %c0_i32 = arith.constant 0 : i32
    %c0_i32_0 = arith.constant 0 : i32
    %c0_i32_1 = arith.constant 0 : i32
    return %c0_i32, %c0_i32_0 : i32, i32
  }
  func.func @transform_2(%arg0: i32, %arg1: memref<1xi32, #tpu.memory_space<smem>>) -> (i32, i32) {
    %c0_i32 = arith.constant 0 : i32
    %c0_i32_0 = arith.constant 0 : i32
    %c0_i32_1 = arith.constant 0 : i32
    return %c0_i32, %c0_i32_0 : i32, i32
  }
  func.func @transform_3(%arg0: i32, %arg1: memref<1xi32, #tpu.memory_space<smem>>) -> (i32, i32) {
    %c0_i32 = arith.constant 0 : i32
    %c0_i32_0 = arith.constant 0 : i32
    %c0_i32_1 = arith.constant 0 : i32
    return %c0_i32, %c0_i32_0 : i32, i32
  }
  func.func @transform_4(%arg0: i32, %arg1: memref<1xi32, #tpu.memory_space<smem>>) -> (i32, i32) {
    %c0_i32 = arith.constant 0 : i32
    %c0_i32_0 = arith.constant 0 : i32
    %c0_i32_1 = arith.constant 0 : i32
    return %c0_i32, %c0_i32_0 : i32, i32
  }
}

</mosaic_0001>

<llo_original>
// kernel: attn_decoder_decode.1
$region0: #{attn_decoder_decode.1}
  #allocation0 [shape = 'u32[]', space=smem, size = 0x4, offset = 0x4, fixed_abs, tag = 'smem constant byte address 0x4 - core index']
  #allocation1 [shape = 'u32[144,128]{1,0:T(1,128)}', space=vmem, size = 0x12000, scoped, tag = 'internal scratch']
  #allocation2 [shape = 'f32[1,32]{1,0:T(1,128)}', space=vmem, size = 0x200, scoped, tag = 'scratch operand']
  #allocation3 [shape = 's32[1]{0}', space=sflag, size = 0x4, scoped, tag = 'scoped memory for attn_decoder_decode.1']
  #allocation4 [shape = 's32[1]{0:T(128)S(6)}', space=smem, size = 0x200, scoped, tag = 'prefetched SMEM operand 0']
  %s0 = inlined_call_operand.<no memory space> [shape: s32[1], index: 0, kind: input, shape index: {}]
  %s1 = inlined_call_operand.vmem [shape: f32[1,32], index: 1, kind: input, shape index: {}]
  %s2 = inlined_call_operand.hbm [shape: f32[48,32], index: 2, kind: input, shape index: {}]
  %s3 = inlined_call_operand.hbm [shape: f32[8,32], index: 3, kind: input, shape index: {}]
  %s4 = inlined_call_operand.hbm [shape: f32[368,128], index: 4, kind: input, shape index: {}]
  %s5 = inlined_call_operand.vmem [shape: f32[1,128], index: 5, kind: output, shape index: {}]
  %s6 = sld [smem:[#allocation0]]
  $region42: #{attn_decoder_decode.1} parent=0
    _
  %s8 = ssub.s32 1, %s6
  %s9 = scalar_select 0, %s8, %s6
  %10 = sst [smem:[#allocation4]] %s0
  $region1: #{attn_decoder_decode.1} parent=0
    #allocation5 [shape = 'u8[24576]{0}', space=vmem, size = 0x6000, scoped, tag = 'input window, operand 2, single buffered']
    #allocation6 [shape = 's32[1]{0}', space=sflag, size = 0x4, scoped, tag = 'scoped memory for attn_decoder_decode.1']
    #allocation7 [shape = 'u8[4096]{0}', space=vmem, size = 0x1000, scoped, tag = 'input window, operand 3, single buffered']
    #allocation8 [shape = 's32[1]{0}', space=sflag, size = 0x4, scoped, tag = 'scoped memory for attn_decoder_decode.1']
    #allocation9 [shape = 'u8[188416]{0}', space=vmem, size = 0x2e000, scoped, tag = 'input window, operand 4, single buffered']
    %11 = vsyncpa [#allocation6], 0
    %12 = vsyncpa [#allocation8], 0
    // Predicated region
    $region2: #{attn_decoder_decode.1} parent=1 // pred_check
      _
    $region3: #{attn_decoder_decode.1} parent=1 // pred_check_branch
      %14 = sbr.rel (0) target = $region5
    $region4: #{attn_decoder_decode.1} parent=1 // pred_region
      _
    $region5: #{attn_decoder_decode.1} parent=1 // pred_fallthru
      _
    // Predicated region
    $region6: #{attn_decoder_decode.1} parent=1 // pred_check
      _
    $region7: #{attn_decoder_decode.1} parent=1 // pred_check_branch
      %16 = sbr.rel (0) target = $region9
    $region8: #{attn_decoder_decode.1} parent=1 // pred_region
      %s18 = ssub.s32 768, 768
      %19 = vsyncadd [#allocation6], %s18
      %s20 = sshll.u32 [#allocation5], 4
      %s21 = int_to_ptr.vmem [resolvable:$true] %s20
      %26 = dma.hbm_to_vmem [thread:$0]  %s2, 768, %s21, [#allocation6], 128, 128, 8
    $region9: #{attn_decoder_decode.1} parent=1 // pred_fallthru
      _
    // Predicated region
    $region10: #{attn_decoder_decode.1} parent=1 // pred_check
      _
    $region11: #{attn_decoder_decode.1} parent=1 // pred_check_branch
      %28 = sbr.rel (0) target = $region13
    $region12: #{attn_decoder_decode.1} parent=1 // pred_region
      %s30 = ssub.s32 128, 128
      %31 = vsyncadd [#allocation8], %s30
      %s33 = sshll.u32 [#allocation7], 4
      %s34 = int_to_ptr.vmem [resolvable:$true] %s33
      %36 = dma.hbm_to_vmem [thread:$0]  %s3, 128, %s34, [#allocation8]
    $region13: #{attn_decoder_decode.1} parent=1 // pred_fallthru
      _
    // Predicated region
    $region14: #{attn_decoder_decode.1} parent=1 // pred_check
      _
    $region15: #{attn_decoder_decode.1} parent=1 // pred_check_branch
      %38 = sbr.rel (0) target = $region17
    $region16: #{attn_decoder_decode.1} parent=1 // pred_region
      %s40 = ssub.s32 5888, 5888
      %41 = vsyncadd [#allocation8], %s40
      %s42 = sshll.u32 [#allocation9], 4
      %s43 = int_to_ptr.vmem [resolvable:$true] %s42
      %48 = dma.hbm_to_vmem [thread:$0]  %s4, 5888, %s43, [#allocation8], 128, 128, 8
    $region17: #{attn_decoder_decode.1} parent=1 // pred_fallthru
      _
    // Predicated region
    $region18: #{attn_decoder_decode.1} parent=1 // pred_check
      _
    $region19: #{attn_decoder_decode.1} parent=1 // pred_check_branch
      %50 = sbr.rel (0) target = $region21
    $region20: #{attn_decoder_decode.1} parent=1 // pred_region
      %51 = dma.done [#allocation6], 768
    $region21: #{attn_decoder_decode.1} parent=1 // pred_fallthru
      _
    // Predicated region
    $region22: #{attn_decoder_decode.1} parent=1 // pred_check
      _
    $region23: #{attn_decoder_decode.1} parent=1 // pred_check_branch
      %53 = sbr.rel (0) target = $region25
    $region24: #{attn_decoder_decode.1} parent=1 // pred_region
      %54 = dma.done [#allocation8], 128
    $region25: #{attn_decoder_decode.1} parent=1 // pred_fallthru
      _
    // Predicated region
    $region26: #{attn_decoder_decode.1} parent=1 // pred_check
      _
    $region27: #{attn_decoder_decode.1} parent=1 // pred_check_branch
      %56 = sbr.rel (0) target = $region29
    $region28: #{attn_decoder_decode.1} parent=1 // pred_region
      %57 = dma.done [#allocation8], 5888
    $region29: #{attn_decoder_decode.1} parent=1 // pred_fallthru
      _
    %p58 = scmp.eq.s32.totalorder 0, 0
    // Predicated region
    $region30: #{attn_decoder_decode.1} parent=1 // pred_check
      %p59 = pneg %p58
    $region31: #{attn_decoder_decode.1} parent=1 // pred_check_branch
      %61 = sbr.rel (%p59) target = $region33
    $region32: #{attn_decoder_decode.1} parent=1 // pred_region
      %v62 = vld [vmem:[%s1] sm:$0x1]
      %vm63 = vcmask 253952
      %64 = vst.msk [vmem:[#allocation2] sm:$0x1] %vm63, %v62
    $region33: #{attn_decoder_decode.1} parent=1 // pred_fallthru
      _
    %s65 = sld [smem:[#allocation4]]
    %s66 = scalar_lea.vmem [#allocation5], %s65
    %v67 = vld [vmem:[%s66] sm:$0x1]
    %v68 = vld [vmem:[#allocation2] sm:$0x1]
    %v69 = vld [vmem:[#allocation9] sm:$0xff]
    %v70 = vld [vmem:[#allocation9 + $0x8] sm:$0xff]
    %v71 = vld [vmem:[#allocation9 + $0x10] sm:$0xff]
    %v72 = vld [vmem:[#allocation9 + $0x18] sm:$0xff]
    %v73 = vld [vmem:[#allocation9 + $0x20] sm:$0xff]
    %v74 = vld [vmem:[#allocation9 + $0x28] sm:$0xff]
    %v75 = vld [vmem:[#allocation9 + $0x30] sm:$0xff]
    %v76 = vld [vmem:[#allocation9 + $0x38] sm:$0xff]
    %vm77 = vcmask 261120
    %v79 = vsel %vm77, %v68, 0
    %81 = vmatprep.subr.mxu0 0.0
    %82 = vmatpush1.msra.mxu0 0.0
    %83 = vmatprep.subr.mxu0 0.0
    %84 = vmatpush1.msra.mxu0 0.0
    %85 = vmatprep.subr.mxu0 0.0
    %86 = vmatpush1.msra.mxu0 0.0
    %87 = vmatprep.subr.mxu0 0.0
    %88 = vmatpush1.msra.mxu0 0.0
    %89 = vmatprep.subr.mxu0 0.0
    %90 = vmatpush1.msra.mxu0 0.0
    %91 = vmatprep.subr.mxu0 0.0
    %92 = vmatpush1.msra.mxu0 0.0
    %93 = vmatprep.subr.mxu0 0.0
    %94 = vmatpush1.msra.mxu0 0.0
    %95 = vmatprep.subr.mxu0 0.0
    %96 = vmatpush1.msra.mxu0 0.0
    %97 = vmatprep.subr.mxu0 0.0
    %98 = vmatpush1.msra.mxu0 0.0
    %99 = vmatprep.subr.mxu0 0.0
    %100 = vmatpush1.msra.mxu0 0.0
    %101 = vmatprep.subr.mxu0 0.0
    %102 = vmatpush1.msra.mxu0 0.0
    %103 = vmatprep.subr.mxu0 0.0
    %104 = vmatpush1.msra.mxu0 0.0
    %105 = vmatprep.subr.mxu0 0.0
    %106 = vmatpush1.msra.mxu0 %v76
    %107 = vmatprep.subr.mxu0 0.0
    %108 = vmatpush1.msra.mxu0 %v75
    %109 = vmatprep.subr.mxu0 0.0
    %110 = vmatpush1.msra.mxu0 %v74
    %111 = vmatprep.subr.mxu0 0.0
    %112 = vmatpush1.msra.mxu0 %v73
    %113 = vmatprep.subr.mxu0 0.0
    %114 = vmatpush2.msra.mxu0 0.0
    %115 = vmatprep.subr.mxu0 0.0
    %116 = vmatpush2.msra.mxu0 0.0
    %117 = vmatprep.subr.mxu0 0.0
    %118 = vmatpush2.msra.mxu0 0.0
    %119 = vmatprep.subr.mxu0 0.0
    %120 = vmatpush2.msra.mxu0 0.0
    %121 = vmatprep.subr.mxu0 0.0
    %122 = vmatpush2.msra.mxu0 0.0
    %123 = vmatprep.subr.mxu0 0.0
    %124 = vmatpush2.msra.mxu0 0.0
    %125 = vmatprep.subr.mxu0 0.0
    %126 = vmatpush2.msra.mxu0 0.0
    %127 = vmatprep.subr.mxu0 0.0
    %128 = vmatpush2.msra.mxu0 0.0
    %129 = vmatprep.subr.mxu0 0.0
    %130 = vmatpush2.msra.mxu0 0.0
    %131 = vmatprep.subr.mxu0 0.0
    %132 = vmatpush2.msra.mxu0 0.0
    %133 = vmatprep.subr.mxu0 0.0
    %134 = vmatpush2.msra.mxu0 0.0
    %135 = vmatprep.subr.mxu0 0.0
    %136 = vmatpush2.msra.mxu0 0.0
    %137 = vmatprep.subr.mxu0 0.0
    %138 = vmatpush2.msra.mxu0 0.0
    %139 = vmatprep.subr.mxu0 0.0
    %140 = vmatpush2.msra.mxu0 0.0
    %141 = vmatprep.subr.mxu0 0.0
    %142 = vmatpush2.msra.mxu0 0.0
    %143 = vmatprep.subr.mxu0 0.0
    %144 = vmatpush2.msra.mxu0 0.0
    %145 = vmatprep.mubr.f32.mxu0 0.0
    %146 = vmatmul.mubr.f32.gmra.mxu0 %v79
    %v147 = vpop.f32.mrf.mxu0
    %v148 = vadd.f32 0.0, %v147
    %v149 = vpop.f32.mrf.mxu0
    %150 = vdwg.mxu0
    %v152 = vsel %vm77, %v67, 0
    %154 = vmatprep.subr.mxu0 0.0
    %155 = vmatpush1.msra.mxu0 0.0
    %156 = vmatprep.subr.mxu0 0.0
    %157 = vmatpush1.msra.mxu0 0.0
    %158 = vmatprep.subr.mxu0 0.0
    %159 = vmatpush1.msra.mxu0 0.0
    %160 = vmatprep.subr.mxu0 0.0
    %161 = vmatpush1.msra.mxu0 0.0
    %162 = vmatprep.subr.mxu0 0.0
    %163 = vmatpush1.msra.mxu0 0.0
    %164 = vmatprep.subr.mxu0 0.0
    %165 = vmatpush1.msra.mxu0 0.0
    %166 = vmatprep.subr.mxu0 0.0
    %167 = vmatpush1.msra.mxu0 0.0
    %168 = vmatprep.subr.mxu0 0.0
    %169 = vmatpush1.msra.mxu0 0.0
    %170 = vmatprep.subr.mxu0 0.0
    %171 = vmatpush1.msra.mxu0 0.0
    %172 = vmatprep.subr.mxu0 0.0
    %173 = vmatpush1.msra.mxu0 0.0
    %174 = vmatprep.subr.mxu0 0.0
    %175 = vmatpush1.msra.mxu0 0.0
    %176 = vmatprep.subr.mxu0 0.0
    %177 = vmatpush1.msra.mxu0 0.0
    %178 = vmatprep.subr.mxu0 0.0
    %179 = vmatpush1.msra.mxu0 %v72
    %180 = vmatprep.subr.mxu0 0.0
    %181 = vmatpush1.msra.mxu0 %v71
    %182 = vmatprep.subr.mxu0 0.0
    %183 = vmatpush1.msra.mxu0 %v70
    %184 = vmatprep.subr.mxu0 0.0
    %185 = vmatpush1.msra.mxu0 %v69
    %186 = vmatprep.subr.mxu0 0.0
    %187 = vmatpush2.msra.mxu0 0.0
    %188 = vmatprep.subr.mxu0 0.0
    %189 = vmatpush2.msra.mxu0 0.0
    %190 = vmatprep.subr.mxu0 0.0
    %191 = vmatpush2.msra.mxu0 0.0
    %192 = vmatprep.subr.mxu0 0.0
    %193 = vmatpush2.msra.mxu0 0.0
    %194 = vmatprep.subr.mxu0 0.0
    %195 = vmatpush2.msra.mxu0 0.0
    %196 = vmatprep.subr.mxu0 0.0
    %197 = vmatpush2.msra.mxu0 0.0
    %198 = vmatprep.subr.mxu0 0.0
    %199 = vmatpush2.msra.mxu0 0.0
    %200 = vmatprep.subr.mxu0 0.0
    %201 = vmatpush2.msra.mxu0 0.0
    %202 = vmatprep.subr.mxu0 0.0
    %203 = vmatpush2.msra.mxu0 0.0
    %204 = vmatprep.subr.mxu0 0.0
    %205 = vmatpush2.msra.mxu0 0.0
    %206 = vmatprep.subr.mxu0 0.0
    %207 = vmatpush2.msra.mxu0 0.0
    %208 = vmatprep.subr.mxu0 0.0
    %209 = vmatpush2.msra.mxu0 0.0
    %210 = vmatprep.subr.mxu0 0.0
    %211 = vmatpush2.msra.mxu0 0.0
    %212 = vmatprep.subr.mxu0 0.0
    %213 = vmatpush2.msra.mxu0 0.0
    %214 = vmatprep.subr.mxu0 0.0
    %215 = vmatpush2.msra.mxu0 0.0
    %216 = vmatprep.subr.mxu0 0.0
    %217 = vmatpush2.msra.mxu0 0.0
    %218 = vmatprep.mubr.f32.mxu0 0.0
    %219 = vmatmul.mubr.f32.gmra.mxu0 %v152
    %v220 = vpop.f32.mrf.mxu0
    %v221 = vadd.f32 %v148, %v220
    %v222 = vpop.f32.mrf.mxu0
    %223 = vdwg.mxu0
    %v224 = vld [vmem:[#allocation9 + $0x160] sm:$0x1]
    %v225 = vadd.f32 %v221, %v224
    %vm226 = vcmask 57344
    %v227 = vsel %vm226, %v225, -inf
    %228 = vmax.xlane.f32.xlu0 %v227
    %v229 = vpop.xlane.xlu0 %228
    %v230 = vsub.f32 %v225, %v229
    %v231 = vmul.f32 %v230, 1.442695
    %v232 = vpow.pop %v231
    %v233 = vsel %vm226, %v232, 0.0
    %234 = vadd.xlane.f32.xlu0 %v233
    %v235 = vpop.xlane.xlu0 %234
    %v236 = vrcp.pop %v235
    %v237 = vmul.f32 %v232, %v236
    %v238 = vld [vmem:[#allocation7] sm:$0xff]
    %vm239 = vcmask 64512
    %v241 = vsel %vm239, %v237, 0
    %243 = vmatprep.subr.mxu0 0.0
    %244 = vmatpush1.msra.mxu0 0.0
    %245 = vmatprep.subr.mxu0 0.0
    %246 = vmatpush1.msra.mxu0 0.0
    %247 = vmatprep.subr.mxu0 0.0
    %248 = vmatpush1.msra.mxu0 0.0
    %249 = vmatprep.subr.mxu0 0.0
    %250 = vmatpush1.msra.mxu0 0.0
    %251 = vmatprep.subr.mxu0 0.0
    %252 = vmatpush1.msra.mxu0 0.0
    %253 = vmatprep.subr.mxu0 0.0
    %254 = vmatpush1.msra.mxu0 0.0
    %255 = vmatprep.subr.mxu0 0.0
    %256 = vmatpush1.msra.mxu0 0.0
    %257 = vmatprep.subr.mxu0 0.0
    %258 = vmatpush1.msra.mxu0 0.0
    %259 = vmatprep.subr.mxu0 0.0
    %260 = vmatpush1.msra.mxu0 0.0
    %261 = vmatprep.subr.mxu0 0.0
    %262 = vmatpush1.msra.mxu0 0.0
    %263 = vmatprep.subr.mxu0 0.0
    %264 = vmatpush1.msra.mxu0 0.0
    %265 = vmatprep.subr.mxu0 0.0
    %266 = vmatpush1.msra.mxu0 0.0
    %267 = vmatprep.subr.mxu0 0.0
    %268 = vmatpush1.msra.mxu0 0.0
    %269 = vmatprep.subr.mxu0 0.0
    %270 = vmatpush1.msra.mxu0 0.0
    %271 = vmatprep.subr.mxu0 0.0
    %272 = vmatpush1.msra.mxu0 0.0
    %273 = vmatprep.subr.mxu0 0.0
    %274 = vmatpush1.msra.mxu0 %v238
    %275 = vmatprep.subr.mxu0 0.0
    %276 = vmatpush2.msra.mxu0 0.0
    %277 = vmatprep.subr.mxu0 0.0
    %278 = vmatpush2.msra.mxu0 0.0
    %279 = vmatprep.subr.mxu0 0.0
    %280 = vmatpush2.msra.mxu0 0.0
    %281 = vmatprep.subr.mxu0 0.0
    %282 = vmatpush2.msra.mxu0 0.0
    %283 = vmatprep.subr.mxu0 0.0
    %284 = vmatpush2.msra.mxu0 0.0
    %285 = vmatprep.subr.mxu0 0.0
    %286 = vmatpush2.msra.mxu0 0.0
    %287 = vmatprep.subr.mxu0 0.0
    %288 = vmatpush2.msra.mxu0 0.0
    %289 = vmatprep.subr.mxu0 0.0
    %290 = vmatpush2.msra.mxu0 0.0
    %291 = vmatprep.subr.mxu0 0.0
    %292 = vmatpush2.msra.mxu0 0.0
    %293 = vmatprep.subr.mxu0 0.0
    %294 = vmatpush2.msra.mxu0 0.0
    %295 = vmatprep.subr.mxu0 0.0
    %296 = vmatpush2.msra.mxu0 0.0
    %297 = vmatprep.subr.mxu0 0.0
    %298 = vmatpush2.msra.mxu0 0.0
    %299 = vmatprep.subr.mxu0 0.0
    %300 = vmatpush2.msra.mxu0 0.0
    %301 = vmatprep.subr.mxu0 0.0
    %302 = vmatpush2.msra.mxu0 0.0
    %303 = vmatprep.subr.mxu0 0.0
    %304 = vmatpush2.msra.mxu0 0.0
    %305 = vmatprep.subr.mxu0 0.0
    %306 = vmatpush2.msra.mxu0 0.0
    %307 = vmatprep.mubr.f32.mxu0 0.0
    %308 = vmatmul.mubr.f32.gmra.mxu0 %v241
    %v309 = vpop.f32.mrf.mxu0
    %v310 = vadd.f32 0.0, %v309
    %v311 = vpop.f32.mrf.mxu0
    %312 = vdwg.mxu0
    %v313 = vld [vmem:[#allocation9 + $0x40] sm:$0xff]
    %v314 = vld [vmem:[#allocation9 + $0x48] sm:$0xff]
    %v315 = vld [vmem:[#allocation9 + $0x50] sm:$0xff]
    %v316 = vld [vmem:[#allocation9 + $0x58] sm:$0xff]
    %v317 = vld [vmem:[#allocation9 + $0x60] sm:$0xff]
    %v318 = vld [vmem:[#allocation9 + $0x68] sm:$0xff]
    %v319 = vld [vmem:[#allocation9 + $0x70] sm:$0xff]
    %v320 = vld [vmem:[#allocation9 + $0x78] sm:$0xff]
    %v322 = vsel %vm77, %v310, 0
    %324 = vmatprep.subr.mxu0 0.0
    %325 = vmatpush1.msra.mxu0 0.0
    %326 = vmatprep.subr.mxu0 0.0
    %327 = vmatpush1.msra.mxu0 0.0
    %328 = vmatprep.subr.mxu0 0.0
    %329 = vmatpush1.msra.mxu0 0.0
    %330 = vmatprep.subr.mxu0 0.0
    %331 = vmatpush1.msra.mxu0 0.0
    %332 = vmatprep.subr.mxu0 0.0
    %333 = vmatpush1.msra.mxu0 0.0
    %334 = vmatprep.subr.mxu0 0.0
    %335 = vmatpush1.msra.mxu0 0.0
    %336 = vmatprep.subr.mxu0 0.0
    %337 = vmatpush1.msra.mxu0 0.0
    %338 = vmatprep.subr.mxu0 0.0
    %339 = vmatpush1.msra.mxu0 0.0
    %340 = vmatprep.subr.mxu0 0.0
    %341 = vmatpush1.msra.mxu0 0.0
    %342 = vmatprep.subr.mxu0 0.0
    %343 = vmatpush1.msra.mxu0 0.0
    %344 = vmatprep.subr.mxu0 0.0
    %345 = vmatpush1.msra.mxu0 0.0
    %346 = vmatprep.subr.mxu0 0.0
    %347 = vmatpush1.msra.mxu0 0.0
    %348 = vmatprep.subr.mxu0 0.0
    %349 = vmatpush1.msra.mxu0 %v320
    %350 = vmatprep.subr.mxu0 0.0
    %351 = vmatpush1.msra.mxu0 %v319
    %352 = vmatprep.subr.mxu0 0.0
    %353 = vmatpush1.msra.mxu0 %v318
    %354 = vmatprep.subr.mxu0 0.0
    %355 = vmatpush1.msra.mxu0 %v317
    %356 = vmatprep.subr.mxu0 0.0
    %357 = vmatpush2.msra.mxu0 0.0
    %358 = vmatprep.subr.mxu0 0.0
    %359 = vmatpush2.msra.mxu0 0.0
    %360 = vmatprep.subr.mxu0 0.0
    %361 = vmatpush2.msra.mxu0 0.0
    %362 = vmatprep.subr.mxu0 0.0
    %363 = vmatpush2.msra.mxu0 0.0
    %364 = vmatprep.subr.mxu0 0.0
    %365 = vmatpush2.msra.mxu0 0.0
    %366 = vmatprep.subr.mxu0 0.0
    %367 = vmatpush2.msra.mxu0 0.0
    %368 = vmatprep.subr.mxu0 0.0
    %369 = vmatpush2.msra.mxu0 0.0
    %370 = vmatprep.subr.mxu0 0.0
    %371 = vmatpush2.msra.mxu0 0.0
    %372 = vmatprep.subr.mxu0 0.0
    %373 = vmatpush2.msra.mxu0 0.0
    %374 = vmatprep.subr.mxu0 0.0
    %375 = vmatpush2.msra.mxu0 0.0
    %376 = vmatprep.subr.mxu0 0.0
    %377 = vmatpush2.msra.mxu0 0.0
    %378 = vmatprep.subr.mxu0 0.0
    %379 = vmatpush2.msra.mxu0 0.0
    %380 = vmatprep.subr.mxu0 0.0
    %381 = vmatpush2.msra.mxu0 0.0
    %382 = vmatprep.subr.mxu0 0.0
    %383 = vmatpush2.msra.mxu0 0.0
    %384 = vmatprep.subr.mxu0 0.0
    %385 = vmatpush2.msra.mxu0 0.0
    %386 = vmatprep.subr.mxu0 0.0
    %387 = vmatpush2.msra.mxu0 0.0
    %388 = vmatprep.mubr.f32.mxu0 0.0
    %389 = vmatmul.mubr.f32.gmra.mxu0 %v322
    %v390 = vpop.f32.mrf.mxu0
    %v391 = vadd.f32 0.0, %v390
    %v392 = vpop.f32.mrf.mxu0
    %393 = vdwg.mxu0
    %394 = vmatprep.subr.mxu0 0.0
    %395 = vmatpush1.msra.mxu0 0.0
    %396 = vmatprep.subr.mxu0 0.0
    %397 = vmatpush1.msra.mxu0 0.0
    %398 = vmatprep.subr.mxu0 0.0
    %399 = vmatpush1.msra.mxu0 0.0
    %400 = vmatprep.subr.mxu0 0.0
    %401 = vmatpush1.msra.mxu0 0.0
    %402 = vmatprep.subr.mxu0 0.0
    %403 = vmatpush1.msra.mxu0 0.0
    %404 = vmatprep.subr.mxu0 0.0
    %405 = vmatpush1.msra.mxu0 0.0
    %406 = vmatprep.subr.mxu0 0.0
    %407 = vmatpush1.msra.mxu0 0.0
    %408 = vmatprep.subr.mxu0 0.0
    %409 = vmatpush1.msra.mxu0 0.0
    %410 = vmatprep.subr.mxu0 0.0
    %411 = vmatpush1.msra.mxu0 0.0
    %412 = vmatprep.subr.mxu0 0.0
    %413 = vmatpush1.msra.mxu0 0.0
    %414 = vmatprep.subr.mxu0 0.0
    %415 = vmatpush1.msra.mxu0 0.0
    %416 = vmatprep.subr.mxu0 0.0
    %417 = vmatpush1.msra.mxu0 0.0
    %418 = vmatprep.subr.mxu0 0.0
    %419 = vmatpush1.msra.mxu0 %v316
    %420 = vmatprep.subr.mxu0 0.0
    %421 = vmatpush1.msra.mxu0 %v315
    %422 = vmatprep.subr.mxu0 0.0
    %423 = vmatpush1.msra.mxu0 %v314
    %424 = vmatprep.subr.mxu0 0.0
    %425 = vmatpush1.msra.mxu0 %v313
    %426 = vmatprep.subr.mxu0 0.0
    %427 = vmatpush2.msra.mxu0 0.0
    %428 = vmatprep.subr.mxu0 0.0
    %429 = vmatpush2.msra.mxu0 0.0
    %430 = vmatprep.subr.mxu0 0.0
    %431 = vmatpush2.msra.mxu0 0.0
    %432 = vmatprep.subr.mxu0 0.0
    %433 = vmatpush2.msra.mxu0 0.0
    %434 = vmatprep.subr.mxu0 0.0
    %435 = vmatpush2.msra.mxu0 0.0
    %436 = vmatprep.subr.mxu0 0.0
    %437 = vmatpush2.msra.mxu0 0.0
    %438 = vmatprep.subr.mxu0 0.0
    %439 = vmatpush2.msra.mxu0 0.0
    %440 = vmatprep.subr.mxu0 0.0
    %441 = vmatpush2.msra.mxu0 0.0
    %442 = vmatprep.subr.mxu0 0.0
    %443 = vmatpush2.msra.mxu0 0.0
    %444 = vmatprep.subr.mxu0 0.0
    %445 = vmatpush2.msra.mxu0 0.0
    %446 = vmatprep.subr.mxu0 0.0
    %447 = vmatpush2.msra.mxu0 0.0
    %448 = vmatprep.subr.mxu0 0.0
    %449 = vmatpush2.msra.mxu0 0.0
    %450 = vmatprep.subr.mxu0 0.0
    %451 = vmatpush2.msra.mxu0 0.0
    %452 = vmatprep.subr.mxu0 0.0
    %453 = vmatpush2.msra.mxu0 0.0
    %454 = vmatprep.subr.mxu0 0.0
    %455 = vmatpush2.msra.mxu0 0.0
    %456 = vmatprep.subr.mxu0 0.0
    %457 = vmatpush2.msra.mxu0 0.0
    %458 = vmatprep.mubr.f32.mxu0 0.0
    %459 = vmatmul.mubr.f32.gmra.mxu0 %v152
    %v460 = vpop.f32.mrf.mxu0
    %v461 = vadd.f32 %v391, %v460
    %v462 = vpop.f32.mrf.mxu0
    %463 = vdwg.mxu0
    %v464 = vld [vmem:[#allocation9 + $0x161] sm:$0x1]
    %v465 = vadd.f32 %v461, %v464
    %v466 = vmax.f32 %v465, 0.0
    %v467 = vld [vmem:[#allocation9 + $0x80] sm:$0xff]
    %v468 = vld [vmem:[#allocation9 + $0x88] sm:$0xff]
    %v469 = vld [vmem:[#allocation9 + $0x90] sm:$0xff]
    %v470 = vld [vmem:[#allocation9 + $0x98] sm:$0xff]
    %v471 = vld [vmem:[#allocation9 + $0x162] sm:$0x1]
    %v473 = vsel %vm77, %v466, 0
    %475 = vmatprep.subr.mxu0 0.0
    %476 = vmatpush1.msra.mxu0 0.0
    %477 = vmatprep.subr.mxu0 0.0
    %478 = vmatpush1.msra.mxu0 0.0
    %479 = vmatprep.subr.mxu0 0.0
    %480 = vmatpush1.msra.mxu0 0.0
    %481 = vmatprep.subr.mxu0 0.0
    %482 = vmatpush1.msra.mxu0 0.0
    %483 = vmatprep.subr.mxu0 0.0
    %484 = vmatpush1.msra.mxu0 0.0
    %485 = vmatprep.subr.mxu0 0.0
    %486 = vmatpush1.msra.mxu0 0.0
    %487 = vmatprep.subr.mxu0 0.0
    %488 = vmatpush1.msra.mxu0 0.0
    %489 = vmatprep.subr.mxu0 0.0
    %490 = vmatpush1.msra.mxu0 0.0
    %491 = vmatprep.subr.mxu0 0.0
    %492 = vmatpush1.msra.mxu0 0.0
    %493 = vmatprep.subr.mxu0 0.0
    %494 = vmatpush1.msra.mxu0 0.0
    %495 = vmatprep.subr.mxu0 0.0
    %496 = vmatpush1.msra.mxu0 0.0
    %497 = vmatprep.subr.mxu0 0.0
    %498 = vmatpush1.msra.mxu0 0.0
    %499 = vmatprep.subr.mxu0 0.0
    %500 = vmatpush1.msra.mxu0 %v470
    %501 = vmatprep.subr.mxu0 0.0
    %502 = vmatpush1.msra.mxu0 %v469
    %503 = vmatprep.subr.mxu0 0.0
    %504 = vmatpush1.msra.mxu0 %v468
    %505 = vmatprep.subr.mxu0 0.0
    %506 = vmatpush1.msra.mxu0 %v467
    %507 = vmatprep.subr.mxu0 0.0
    %508 = vmatpush2.msra.mxu0 0.0
    %509 = vmatprep.subr.mxu0 0.0
    %510 = vmatpush2.msra.mxu0 0.0
    %511 = vmatprep.subr.mxu0 0.0
    %512 = vmatpush2.msra.mxu0 0.0
    %513 = vmatprep.subr.mxu0 0.0
    %514 = vmatpush2.msra.mxu0 0.0
    %515 = vmatprep.subr.mxu0 0.0
    %516 = vmatpush2.msra.mxu0 0.0
    %517 = vmatprep.subr.mxu0 0.0
    %518 = vmatpush2.msra.mxu0 0.0
    %519 = vmatprep.subr.mxu0 0.0
    %520 = vmatpush2.msra.mxu0 0.0
    %521 = vmatprep.subr.mxu0 0.0
    %522 = vmatpush2.msra.mxu0 0.0
    %523 = vmatprep.subr.mxu0 0.0
    %524 = vmatpush2.msra.mxu0 0.0
    %525 = vmatprep.subr.mxu0 0.0
    %526 = vmatpush2.msra.mxu0 0.0
    %527 = vmatprep.subr.mxu0 0.0
    %528 = vmatpush2.msra.mxu0 0.0
    %529 = vmatprep.subr.mxu0 0.0
    %530 = vmatpush2.msra.mxu0 0.0
    %531 = vmatprep.subr.mxu0 0.0
    %532 = vmatpush2.msra.mxu0 0.0
    %533 = vmatprep.subr.mxu0 0.0
    %534 = vmatpush2.msra.mxu0 0.0
    %535 = vmatprep.subr.mxu0 0.0
    %536 = vmatpush2.msra.mxu0 0.0
    %537 = vmatprep.subr.mxu0 0.0
    %538 = vmatpush2.msra.mxu0 0.0
    %539 = vmatprep.mubr.f32.mxu0 0.0
    %540 = vmatmul.mubr.f32.gmra.mxu0 %v473
    %v541 = vpop.f32.mrf.mxu0
    %v542 = vadd.f32 %v471, %v541
    %v543 = vpop.f32.mrf.mxu0
    %544 = vdwg.mxu0
    %v545 = vld [vmem:[#allocation9 + $0xe0] sm:$0xff]
    %v546 = vld [vmem:[#allocation9 + $0xe8] sm:$0xff]
    %v547 = vld [vmem:[#allocation9 + $0xf0] sm:$0xff]
    %v548 = vld [vmem:[#allocation9 + $0xf8] sm:$0xff]
    %549 = vmatprep.subr.mxu0 0.0
    %550 = vmatpush1.msra.mxu0 0.0
    %551 = vmatprep.subr.mxu0 0.0
    %552 = vmatpush1.msra.mxu0 0.0
    %553 = vmatprep.subr.mxu0 0.0
    %554 = vmatpush1.msra.mxu0 0.0
    %555 = vmatprep.subr.mxu0 0.0
    %556 = vmatpush1.msra.mxu0 0.0
    %557 = vmatprep.subr.mxu0 0.0
    %558 = vmatpush1.msra.mxu0 0.0
    %559 = vmatprep.subr.mxu0 0.0
    %560 = vmatpush1.msra.mxu0 0.0
    %561 = vmatprep.subr.mxu0 0.0
    %562 = vmatpush1.msra.mxu0 0.0
    %563 = vmatprep.subr.mxu0 0.0
    %564 = vmatpush1.msra.mxu0 0.0
    %565 = vmatprep.subr.mxu0 0.0
    %566 = vmatpush1.msra.mxu0 0.0
    %567 = vmatprep.subr.mxu0 0.0
    %568 = vmatpush1.msra.mxu0 0.0
    %569 = vmatprep.subr.mxu0 0.0
    %570 = vmatpush1.msra.mxu0 0.0
    %571 = vmatprep.subr.mxu0 0.0
    %572 = vmatpush1.msra.mxu0 0.0
    %573 = vmatprep.subr.mxu0 0.0
    %574 = vmatpush1.msra.mxu0 %v548
    %575 = vmatprep.subr.mxu0 0.0
    %576 = vmatpush1.msra.mxu0 %v547
    %577 = vmatprep.subr.mxu0 0.0
    %578 = vmatpush1.msra.mxu0 %v546
    %579 = vmatprep.subr.mxu0 0.0
    %580 = vmatpush1.msra.mxu0 %v545
    %581 = vmatprep.subr.mxu0 0.0
    %582 = vmatpush2.msra.mxu0 0.0
    %583 = vmatprep.subr.mxu0 0.0
    %584 = vmatpush2.msra.mxu0 0.0
    %585 = vmatprep.subr.mxu0 0.0
    %586 = vmatpush2.msra.mxu0 0.0
    %587 = vmatprep.subr.mxu0 0.0
    %588 = vmatpush2.msra.mxu0 0.0
    %589 = vmatprep.subr.mxu0 0.0
    %590 = vmatpush2.msra.mxu0 0.0
    %591 = vmatprep.subr.mxu0 0.0
    %592 = vmatpush2.msra.mxu0 0.0
    %593 = vmatprep.subr.mxu0 0.0
    %594 = vmatpush2.msra.mxu0 0.0
    %595 = vmatprep.subr.mxu0 0.0
    %596 = vmatpush2.msra.mxu0 0.0
    %597 = vmatprep.subr.mxu0 0.0
    %598 = vmatpush2.msra.mxu0 0.0
    %599 = vmatprep.subr.mxu0 0.0
    %600 = vmatpush2.msra.mxu0 0.0
    %601 = vmatprep.subr.mxu0 0.0
    %602 = vmatpush2.msra.mxu0 0.0
    %603 = vmatprep.subr.mxu0 0.0
    %604 = vmatpush2.msra.mxu0 0.0
    %605 = vmatprep.subr.mxu0 0.0
    %606 = vmatpush2.msra.mxu0 0.0
    %607 = vmatprep.subr.mxu0 0.0
    %608 = vmatpush2.msra.mxu0 0.0
    %609 = vmatprep.subr.mxu0 0.0
    %610 = vmatpush2.msra.mxu0 0.0
    %611 = vmatprep.subr.mxu0 0.0
    %612 = vmatpush2.msra.mxu0 0.0
    %613 = vmatprep.mubr.f32.mxu0 0.0
    %614 = vmatmul.mubr.f32.gmra.mxu0 %v79
    %v615 = vpop.f32.mrf.mxu0
    %v616 = vadd.f32 0.0, %v615
    %v617 = vpop.f32.mrf.mxu0
    %618 = vdwg.mxu0
    %v619 = vadd.f32 %v542, %v616
    %v620 = vld [vmem:[#allocation9 + $0x165] sm:$0x1]
    %v621 = vadd.f32 %v619, %v620
    %v622 = vmul.f32 %v621, 0.5
    %v623 = vtanh.pop %v622
    %v624 = vadd.f32 %v623, 1.0
    %v625 = vmul.f32 %v624, 0.5
    %v626 = vld [vmem:[#allocation9 + $0xa0] sm:$0xff]
    %v627 = vld [vmem:[#allocation9 + $0xa8] sm:$0xff]
    %v628 = vld [vmem:[#allocation9 + $0xb0] sm:$0xff]
    %v629 = vld [vmem:[#allocation9 + $0xb8] sm:$0xff]
    %v630 = vld [vmem:[#allocation9 + $0x163] sm:$0x1]
    %631 = vmatprep.subr.mxu0 0.0
    %632 = vmatpush1.msra.mxu0 0.0
    %633 = vmatprep.subr.mxu0 0.0
    %634 = vmatpush1.msra.mxu0 0.0
    %635 = vmatprep.subr.mxu0 0.0
    %636 = vmatpush1.msra.mxu0 0.0
    %637 = vmatprep.subr.mxu0 0.0
    %638 = vmatpush1.msra.mxu0 0.0
    %639 = vmatprep.subr.mxu0 0.0
    %640 = vmatpush1.msra.mxu0 0.0
    %641 = vmatprep.subr.mxu0 0.0
    %642 = vmatpush1.msra.mxu0 0.0
    %643 = vmatprep.subr.mxu0 0.0
    %644 = vmatpush1.msra.mxu0 0.0
    %645 = vmatprep.subr.mxu0 0.0
    %646 = vmatpush1.msra.mxu0 0.0
    %647 = vmatprep.subr.mxu0 0.0
    %648 = vmatpush1.msra.mxu0 0.0
    %649 = vmatprep.subr.mxu0 0.0
    %650 = vmatpush1.msra.mxu0 0.0
    %651 = vmatprep.subr.mxu0 0.0
    %652 = vmatpush1.msra.mxu0 0.0
    %653 = vmatprep.subr.mxu0 0.0
    %654 = vmatpush1.msra.mxu0 0.0
    %655 = vmatprep.subr.mxu0 0.0
    %656 = vmatpush1.msra.mxu0 %v629
    %657 = vmatprep.subr.mxu0 0.0
    %658 = vmatpush1.msra.mxu0 %v628
    %659 = vmatprep.subr.mxu0 0.0
    %660 = vmatpush1.msra.mxu0 %v627
    %661 = vmatprep.subr.mxu0 0.0
    %662 = vmatpush1.msra.mxu0 %v626
    %663 = vmatprep.subr.mxu0 0.0
    %664 = vmatpush2.msra.mxu0 0.0
    %665 = vmatprep.subr.mxu0 0.0
    %666 = vmatpush2.msra.mxu0 0.0
    %667 = vmatprep.subr.mxu0 0.0
    %668 = vmatpush2.msra.mxu0 0.0
    %669 = vmatprep.subr.mxu0 0.0
    %670 = vmatpush2.msra.mxu0 0.0
    %671 = vmatprep.subr.mxu0 0.0
    %672 = vmatpush2.msra.mxu0 0.0
    %673 = vmatprep.subr.mxu0 0.0
    %674 = vmatpush2.msra.mxu0 0.0
    %675 = vmatprep.subr.mxu0 0.0
    %676 = vmatpush2.msra.mxu0 0.0
    %677 = vmatprep.subr.mxu0 0.0
    %678 = vmatpush2.msra.mxu0 0.0
    %679 = vmatprep.subr.mxu0 0.0
    %680 = vmatpush2.msra.mxu0 0.0
    %681 = vmatprep.subr.mxu0 0.0
    %682 = vmatpush2.msra.mxu0 0.0
    %683 = vmatprep.subr.mxu0 0.0
    %684 = vmatpush2.msra.mxu0 0.0
    %685 = vmatprep.subr.mxu0 0.0
    %686 = vmatpush2.msra.mxu0 0.0
    %687 = vmatprep.subr.mxu0 0.0
    %688 = vmatpush2.msra.mxu0 0.0
    %689 = vmatprep.subr.mxu0 0.0
    %690 = vmatpush2.msra.mxu0 0.0
    %691 = vmatprep.subr.mxu0 0.0
    %692 = vmatpush2.msra.mxu0 0.0
    %693 = vmatprep.subr.mxu0 0.0
    %694 = vmatpush2.msra.mxu0 0.0
    %695 = vmatprep.mubr.f32.mxu0 0.0
    %696 = vmatmul.mubr.f32.gmra.mxu0 %v473
    %v697 = vpop.f32.mrf.mxu0
    %v698 = vadd.f32 %v630, %v697
    %v699 = vpop.f32.mrf.mxu0
    %700 = vdwg.mxu0
    %v701 = vld [vmem:[#allocation9 + $0x100] sm:$0xff]
    %v702 = vld [vmem:[#allocation9 + $0x108] sm:$0xff]
    %v703 = vld [vmem:[#allocation9 + $0x110] sm:$0xff]
    %v704 = vld [vmem:[#allocation9 + $0x118] sm:$0xff]
    %705 = vmatprep.subr.mxu0 0.0
    %706 = vmatpush1.msra.mxu0 0.0
    %707 = vmatprep.subr.mxu0 0.0
    %708 = vmatpush1.msra.mxu0 0.0
    %709 = vmatprep.subr.mxu0 0.0
    %710 = vmatpush1.msra.mxu0 0.0
    %711 = vmatprep.subr.mxu0 0.0
    %712 = vmatpush1.msra.mxu0 0.0
    %713 = vmatprep.subr.mxu0 0.0
    %714 = vmatpush1.msra.mxu0 0.0
    %715 = vmatprep.subr.mxu0 0.0
    %716 = vmatpush1.msra.mxu0 0.0
    %717 = vmatprep.subr.mxu0 0.0
    %718 = vmatpush1.msra.mxu0 0.0
    %719 = vmatprep.subr.mxu0 0.0
    %720 = vmatpush1.msra.mxu0 0.0
    %721 = vmatprep.subr.mxu0 0.0
    %722 = vmatpush1.msra.mxu0 0.0
    %723 = vmatprep.subr.mxu0 0.0
    %724 = vmatpush1.msra.mxu0 0.0
    %725 = vmatprep.subr.mxu0 0.0
    %726 = vmatpush1.msra.mxu0 0.0
    %727 = vmatprep.subr.mxu0 0.0
    %728 = vmatpush1.msra.mxu0 0.0
    %729 = vmatprep.subr.mxu0 0.0
    %730 = vmatpush1.msra.mxu0 %v704
    %731 = vmatprep.subr.mxu0 0.0
    %732 = vmatpush1.msra.mxu0 %v703
    %733 = vmatprep.subr.mxu0 0.0
    %734 = vmatpush1.msra.mxu0 %v702
    %735 = vmatprep.subr.mxu0 0.0
    %736 = vmatpush1.msra.mxu0 %v701
    %737 = vmatprep.subr.mxu0 0.0
    %738 = vmatpush2.msra.mxu0 0.0
    %739 = vmatprep.subr.mxu0 0.0
    %740 = vmatpush2.msra.mxu0 0.0
    %741 = vmatprep.subr.mxu0 0.0
    %742 = vmatpush2.msra.mxu0 0.0
    %743 = vmatprep.subr.mxu0 0.0
    %744 = vmatpush2.msra.mxu0 0.0
    %745 = vmatprep.subr.mxu0 0.0
    %746 = vmatpush2.msra.mxu0 0.0
    %747 = vmatprep.subr.mxu0 0.0
    %748 = vmatpush2.msra.mxu0 0.0
    %749 = vmatprep.subr.mxu0 0.0
    %750 = vmatpush2.msra.mxu0 0.0
    %751 = vmatprep.subr.mxu0 0.0
    %752 = vmatpush2.msra.mxu0 0.0
    %753 = vmatprep.subr.mxu0 0.0
    %754 = vmatpush2.msra.mxu0 0.0
    %755 = vmatprep.subr.mxu0 0.0
    %756 = vmatpush2.msra.mxu0 0.0
    %757 = vmatprep.subr.mxu0 0.0
    %758 = vmatpush2.msra.mxu0 0.0
    %759 = vmatprep.subr.mxu0 0.0
    %760 = vmatpush2.msra.mxu0 0.0
    %761 = vmatprep.subr.mxu0 0.0
    %762 = vmatpush2.msra.mxu0 0.0
    %763 = vmatprep.subr.mxu0 0.0
    %764 = vmatpush2.msra.mxu0 0.0
    %765 = vmatprep.subr.mxu0 0.0
    %766 = vmatpush2.msra.mxu0 0.0
    %767 = vmatprep.subr.mxu0 0.0
    %768 = vmatpush2.msra.mxu0 0.0
    %769 = vmatprep.mubr.f32.mxu0 0.0
    %770 = vmatmul.mubr.f32.gmra.mxu0 %v79
    %v771 = vpop.f32.mrf.mxu0
    %v772 = vadd.f32 0.0, %v771
    %v773 = vpop.f32.mrf.mxu0
    %774 = vdwg.mxu0
    %v775 = vadd.f32 %v698, %v772
    %v776 = vld [vmem:[#allocation9 + $0x166] sm:$0x1]
    %v777 = vadd.f32 %v775, %v776
    %v778 = vmul.f32 %v777, 0.5
    %v779 = vtanh.pop %v778
    %v780 = vadd.f32 %v779, 1.0
    %v781 = vmul.f32 %v780, 0.5
    %v782 = vld [vmem:[#allocation9 + $0xc0] sm:$0xff]
    %v783 = vld [vmem:[#allocation9 + $0xc8] sm:$0xff]
    %v784 = vld [vmem:[#allocation9 + $0xd0] sm:$0xff]
    %v785 = vld [vmem:[#allocation9 + $0xd8] sm:$0xff]
    %v786 = vld [vmem:[#allocation9 + $0x164] sm:$0x1]
    %787 = vmatprep.subr.mxu0 0.0
    %788 = vmatpush1.msra.mxu0 0.0
    %789 = vmatprep.subr.mxu0 0.0
    %790 = vmatpush1.msra.mxu0 0.0
    %791 = vmatprep.subr.mxu0 0.0
    %792 = vmatpush1.msra.mxu0 0.0
    %793 = vmatprep.subr.mxu0 0.0
    %794 = vmatpush1.msra.mxu0 0.0
    %795 = vmatprep.subr.mxu0 0.0
    %796 = vmatpush1.msra.mxu0 0.0
    %797 = vmatprep.subr.mxu0 0.0
    %798 = vmatpush1.msra.mxu0 0.0
    %799 = vmatprep.subr.mxu0 0.0
    %800 = vmatpush1.msra.mxu0 0.0
    %801 = vmatprep.subr.mxu0 0.0
    %802 = vmatpush1.msra.mxu0 0.0
    %803 = vmatprep.subr.mxu0 0.0
    %804 = vmatpush1.msra.mxu0 0.0
    %805 = vmatprep.subr.mxu0 0.0
    %806 = vmatpush1.msra.mxu0 0.0
    %807 = vmatprep.subr.mxu0 0.0
    %808 = vmatpush1.msra.mxu0 0.0
    %809 = vmatprep.subr.mxu0 0.0
    %810 = vmatpush1.msra.mxu0 0.0
    %811 = vmatprep.subr.mxu0 0.0
    %812 = vmatpush1.msra.mxu0 %v785
    %813 = vmatprep.subr.mxu0 0.0
    %814 = vmatpush1.msra.mxu0 %v784
    %815 = vmatprep.subr.mxu0 0.0
    %816 = vmatpush1.msra.mxu0 %v783
    %817 = vmatprep.subr.mxu0 0.0
    %818 = vmatpush1.msra.mxu0 %v782
    %819 = vmatprep.subr.mxu0 0.0
    %820 = vmatpush2.msra.mxu0 0.0
    %821 = vmatprep.subr.mxu0 0.0
    %822 = vmatpush2.msra.mxu0 0.0
    %823 = vmatprep.subr.mxu0 0.0
    %824 = vmatpush2.msra.mxu0 0.0
    %825 = vmatprep.subr.mxu0 0.0
    %826 = vmatpush2.msra.mxu0 0.0
    %827 = vmatprep.subr.mxu0 0.0
    %828 = vmatpush2.msra.mxu0 0.0
    %829 = vmatprep.subr.mxu0 0.0
    %830 = vmatpush2.msra.mxu0 0.0
    %831 = vmatprep.subr.mxu0 0.0
    %832 = vmatpush2.msra.mxu0 0.0
    %833 = vmatprep.subr.mxu0 0.0
    %834 = vmatpush2.msra.mxu0 0.0
    %835 = vmatprep.subr.mxu0 0.0
    %836 = vmatpush2.msra.mxu0 0.0
    %837 = vmatprep.subr.mxu0 0.0
    %838 = vmatpush2.msra.mxu0 0.0
    %839 = vmatprep.subr.mxu0 0.0
    %840 = vmatpush2.msra.mxu0 0.0
    %841 = vmatprep.subr.mxu0 0.0
    %842 = vmatpush2.msra.mxu0 0.0
    %843 = vmatprep.subr.mxu0 0.0
    %844 = vmatpush2.msra.mxu0 0.0
    %845 = vmatprep.subr.mxu0 0.0
    %846 = vmatpush2.msra.mxu0 0.0
    %847 = vmatprep.subr.mxu0 0.0
    %848 = vmatpush2.msra.mxu0 0.0
    %849 = vmatprep.subr.mxu0 0.0
    %850 = vmatpush2.msra.mxu0 0.0
    %851 = vmatprep.mubr.f32.mxu0 0.0
    %852 = vmatmul.mubr.f32.gmra.mxu0 %v473
    %v853 = vpop.f32.mrf.mxu0
    %v854 = vadd.f32 %v786, %v853
    %v855 = vpop.f32.mrf.mxu0
    %856 = vdwg.mxu0
    %v857 = vld [vmem:[#allocation9 + $0x120] sm:$0xff]
    %v858 = vld [vmem:[#allocation9 + $0x128] sm:$0xff]
    %v859 = vld [vmem:[#allocation9 + $0x130] sm:$0xff]
    %v860 = vld [vmem:[#allocation9 + $0x138] sm:$0xff]
    %v861 = vld [vmem:[#allocation9 + $0x167] sm:$0x1]
    %862 = vmatprep.subr.mxu0 0.0
    %863 = vmatpush1.msra.mxu0 0.0
    %864 = vmatprep.subr.mxu0 0.0
    %865 = vmatpush1.msra.mxu0 0.0
    %866 = vmatprep.subr.mxu0 0.0
    %867 = vmatpush1.msra.mxu0 0.0
    %868 = vmatprep.subr.mxu0 0.0
    %869 = vmatpush1.msra.mxu0 0.0
    %870 = vmatprep.subr.mxu0 0.0
    %871 = vmatpush1.msra.mxu0 0.0
    %872 = vmatprep.subr.mxu0 0.0
    %873 = vmatpush1.msra.mxu0 0.0
    %874 = vmatprep.subr.mxu0 0.0
    %875 = vmatpush1.msra.mxu0 0.0
    %876 = vmatprep.subr.mxu0 0.0
    %877 = vmatpush1.msra.mxu0 0.0
    %878 = vmatprep.subr.mxu0 0.0
    %879 = vmatpush1.msra.mxu0 0.0
    %880 = vmatprep.subr.mxu0 0.0
    %881 = vmatpush1.msra.mxu0 0.0
    %882 = vmatprep.subr.mxu0 0.0
    %883 = vmatpush1.msra.mxu0 0.0
    %884 = vmatprep.subr.mxu0 0.0
    %885 = vmatpush1.msra.mxu0 0.0
    %886 = vmatprep.subr.mxu0 0.0
    %887 = vmatpush1.msra.mxu0 %v860
    %888 = vmatprep.subr.mxu0 0.0
    %889 = vmatpush1.msra.mxu0 %v859
    %890 = vmatprep.subr.mxu0 0.0
    %891 = vmatpush1.msra.mxu0 %v858
    %892 = vmatprep.subr.mxu0 0.0
    %893 = vmatpush1.msra.mxu0 %v857
    %894 = vmatprep.subr.mxu0 0.0
    %895 = vmatpush2.msra.mxu0 0.0
    %896 = vmatprep.subr.mxu0 0.0
    %897 = vmatpush2.msra.mxu0 0.0
    %898 = vmatprep.subr.mxu0 0.0
    %899 = vmatpush2.msra.mxu0 0.0
    %900 = vmatprep.subr.mxu0 0.0
    %901 = vmatpush2.msra.mxu0 0.0
    %902 = vmatprep.subr.mxu0 0.0
    %903 = vmatpush2.msra.mxu0 0.0
    %904 = vmatprep.subr.mxu0 0.0
    %905 = vmatpush2.msra.mxu0 0.0
    %906 = vmatprep.subr.mxu0 0.0
    %907 = vmatpush2.msra.mxu0 0.0
    %908 = vmatprep.subr.mxu0 0.0
    %909 = vmatpush2.msra.mxu0 0.0
    %910 = vmatprep.subr.mxu0 0.0
    %911 = vmatpush2.msra.mxu0 0.0
    %912 = vmatprep.subr.mxu0 0.0
    %913 = vmatpush2.msra.mxu0 0.0
    %914 = vmatprep.subr.mxu0 0.0
    %915 = vmatpush2.msra.mxu0 0.0
    %916 = vmatprep.subr.mxu0 0.0
    %917 = vmatpush2.msra.mxu0 0.0
    %918 = vmatprep.subr.mxu0 0.0
    %919 = vmatpush2.msra.mxu0 0.0
    %920 = vmatprep.subr.mxu0 0.0
    %921 = vmatpush2.msra.mxu0 0.0
    %922 = vmatprep.subr.mxu0 0.0
    %923 = vmatpush2.msra.mxu0 0.0
    %924 = vmatprep.subr.mxu0 0.0
    %925 = vmatpush2.msra.mxu0 0.0
    %926 = vmatprep.mubr.f32.mxu0 0.0
    %927 = vmatmul.mubr.f32.gmra.mxu0 %v79
    %v928 = vpop.f32.mrf.mxu0
    %v929 = vadd.f32 %v861, %v928
    %v930 = vpop.f32.mrf.mxu0
    %931 = vdwg.mxu0
    %v932 = vmul.f32 %v625, %v929
    %v933 = vadd.f32 %v854, %v932
    %v934 = vtanh.pop %v933
    %v935 = vsub.f32 1.0, %v781
    %v936 = vmul.f32 %v935, %v934
    %v937 = vmul.f32 %v781, %v68
    %v938 = vadd.f32 %v936, %v937
    %v939 = vld [vmem:[#allocation9 + $0x140] sm:$0xff]
    %v940 = vld [vmem:[#allocation9 + $0x148] sm:$0xff]
    %v941 = vld [vmem:[#allocation9 + $0x150] sm:$0xff]
    %v942 = vld [vmem:[#allocation9 + $0x158] sm:$0xff]
    %v943 = vld [vmem:[#allocation9 + $0x168] sm:$0x1]
    %v945 = vsel %vm77, %v938, 0
    %947 = vmatprep.subr.mxu0 0.0
    %948 = vmatpush1.msra.mxu0 0.0
    %949 = vmatprep.subr.mxu0 0.0
    %950 = vmatpush1.msra.mxu0 0.0
    %951 = vmatprep.subr.mxu0 0.0
    %952 = vmatpush1.msra.mxu0 0.0
    %953 = vmatprep.subr.mxu0 0.0
    %954 = vmatpush1.msra.mxu0 0.0
    %955 = vmatprep.subr.mxu0 0.0
    %956 = vmatpush1.msra.mxu0 0.0
    %957 = vmatprep.subr.mxu0 0.0
    %958 = vmatpush1.msra.mxu0 0.0
    %959 = vmatprep.subr.mxu0 0.0
    %960 = vmatpush1.msra.mxu0 0.0
    %961 = vmatprep.subr.mxu0 0.0
    %962 = vmatpush1.msra.mxu0 0.0
    %963 = vmatprep.subr.mxu0 0.0
    %964 = vmatpush1.msra.mxu0 0.0
    %965 = vmatprep.subr.mxu0 0.0
    %966 = vmatpush1.msra.mxu0 0.0
    %967 = vmatprep.subr.mxu0 0.0
    %968 = vmatpush1.msra.mxu0 0.0
    %969 = vmatprep.subr.mxu0 0.0
    %970 = vmatpush1.msra.mxu0 0.0
    %971 = vmatprep.subr.mxu0 0.0
    %972 = vmatpush1.msra.mxu0 %v942
    %973 = vmatprep.subr.mxu0 0.0
    %974 = vmatpush1.msra.mxu0 %v941
    %975 = vmatprep.subr.mxu0 0.0
    %976 = vmatpush1.msra.mxu0 %v940
    %977 = vmatprep.subr.mxu0 0.0
    %978 = vmatpush1.msra.mxu0 %v939
    %979 = vmatprep.subr.mxu0 0.0
    %980 = vmatpush2.msra.mxu0 0.0
    %981 = vmatprep.subr.mxu0 0.0
    %982 = vmatpush2.msra.mxu0 0.0
    %983 = vmatprep.subr.mxu0 0.0
    %984 = vmatpush2.msra.mxu0 0.0
    %985 = vmatprep.subr.mxu0 0.0
    %986 = vmatpush2.msra.mxu0 0.0
    %987 = vmatprep.subr.mxu0 0.0
    %988 = vmatpush2.msra.mxu0 0.0
    %989 = vmatprep.subr.mxu0 0.0
    %990 = vmatpush2.msra.mxu0 0.0
    %991 = vmatprep.subr.mxu0 0.0
    %992 = vmatpush2.msra.mxu0 0.0
    %993 = vmatprep.subr.mxu0 0.0
    %994 = vmatpush2.msra.mxu0 0.0
    %995 = vmatprep.subr.mxu0 0.0
    %996 = vmatpush2.msra.mxu0 0.0
    %997 = vmatprep.subr.mxu0 0.0
    %998 = vmatpush2.msra.mxu0 0.0
    %999 = vmatprep.subr.mxu0 0.0
    %1000 = vmatpush2.msra.mxu0 0.0
    %1001 = vmatprep.subr.mxu0 0.0
    %1002 = vmatpush2.msra.mxu0 0.0
    %1003 = vmatprep.subr.mxu0 0.0
    %1004 = vmatpush2.msra.mxu0 0.0
    %1005 = vmatprep.subr.mxu0 0.0
    %1006 = vmatpush2.msra.mxu0 0.0
    %1007 = vmatprep.subr.mxu0 0.0
    %1008 = vmatpush2.msra.mxu0 0.0
    %1009 = vmatprep.subr.mxu0 0.0
    %1010 = vmatpush2.msra.mxu0 0.0
    %1011 = vmatprep.mubr.f32.mxu0 0.0
    %1012 = vmatmul.mubr.f32.gmra.mxu0 %v945
    %v1013 = vpop.f32.mrf.mxu0
    %v1014 = vadd.f32 %v943, %v1013
    %v1015 = vpop.f32.mrf.mxu0
    %1016 = vdwg.mxu0
    %vm1017 = vcmask 385024
    %v1018 = vsel %vm1017, %v1014, -inf
    %1019 = vmax.xlane.f32.xlu0 %v1018
    %v1020 = vpop.xlane.xlu0 %1019
    %v1021 = vsub.f32 %v1014, %v1020
    %v1022 = vmul.f32 %v1021, 1.442695
    %v1023 = vpow.pop %v1022
    %v1024 = vsel %vm1017, %v1023, 0.0
    %1025 = vadd.xlane.f32.xlu0 %v1024
    %v1026 = vpop.xlane.xlu0 %1025
    %v1027 = vlog2.pop %v1026
    %v1028 = vmul.f32 %v1027, 0.6931472
    %v1029 = vsub.f32 %v1021, %v1028
    %vm1030 = vcmask 253952
    %1031 = vst.msk [vmem:[#allocation2] sm:$0x1] %vm1030, %v938
    %1032 = vrot.lane.b32.xlu0 %v938, 48
    %v1033 = vpop.permute.xlu0 %1032
    %1035 = vrot.lane.b32.xlu0 %v237, 80
    %v1036 = vpop.permute.xlu0 %1035
    %vm1038 = vcmask 392192
    %v1039 = vsel %vm1038, %v1029, %v1033
    %vm1040 = vcmask 654336
    %v1041 = vsel %vm1040, %v1039, %v1036
    %vm1042 = vcmask 719872
    %v1043 = vsel %vm1042, %v1041, 0.0
    %1044 = vst [vmem:[%s5] sm:$0x1] %v1043
    // Predicated region
    $region34: #{attn_decoder_decode.1} parent=1 // pred_check
      _
    $region35: #{attn_decoder_decode.1} parent=1 // pred_check_branch
      %1046 = sbr.rel (0) target = $region37
    $region36: #{attn_decoder_decode.1} parent=1 // pred_region
      _
    $region37: #{attn_decoder_decode.1} parent=1 // pred_fallthru
      _
    // Predicated region
    $region38: #{attn_decoder_decode.1} parent=1 // pred_check
      _
    $region39: #{attn_decoder_decode.1} parent=1 // pred_check_branch
      %1048 = sbr.rel (0) target = $region41
    $region40: #{attn_decoder_decode.1} parent=1 // pred_region
      _
    $region41: #{attn_decoder_decode.1} parent=1 // pred_fallthru
      _
    %1049 = vsyncpa [#allocation6], 1
    %1050 = vsyncpa [#allocation8], 1

</llo_original>
